<compile_context>
chip_gen: v7x
topology: tpu7x:2x2x1
jax: 0.10.0
libtpu: 0.0.40
codegen_flags: <defaults>
</compile_context>

<pallas_src>
import functools

import jax
import jax.numpy as jnp
from jax import lax
from jax.experimental import pallas as pl
from jax.experimental.pallas import tpu as pltpu

_LANES = 128
# (2048, 128) f32 block = 1 MiB per input per grid step; 2 inputs x 2 pipeline
# buffers + 1 MiB accumulator = ~5 MiB VMEM -> fits default scoped limits on
# v5e (16 MiB), v6e (32 MiB) and v7x (32 MiB) without raising vmem_limit_bytes.
_DEFAULT_BLOCK_ROWS = 2048


# ----------------------------------------------------------------------------
# Pallas kernel: full sum-reduction of (preds - targets)**2 over a tiled grid.
# ----------------------------------------------------------------------------
def _sq_diff_sum_kernel(p_ref, t_ref, o_ref, acc_ref, *,
                        blocks_per_part, block_rows, rows, needs_mask):
    b = pl.program_id(1)

    @pl.when(b == 0)
    def _():
        acc_ref[...] = jnp.zeros_like(acc_ref)

    # Cast per-tile in VMEM (cheap VPU work, hidden under DMA) so HBM traffic
    # stays at the input dtype width (2x saving for bf16 inputs).
    d = p_ref[...].astype(jnp.float32) - t_ref[...].astype(jnp.float32)
    sq = d * d

    if needs_mask:
        # Ragged last block and/or phantom blocks introduced by the parallel
        # split: zero rows past the logical extent.  Statically skipped when
        # the row count divides evenly.
        c = pl.program_id(0)
        row_start = (c * blocks_per_part + b) * block_rows
        row_ids = row_start + lax.broadcasted_iota(jnp.int32, sq.shape, 0)
        sq = jnp.where(row_ids < rows, sq, 0.0)

    # Full-vreg elementwise accumulation -- no per-step cross-sublane reduce.
    acc_ref[...] += sq

    @pl.when(b == pl.num_programs(1) - 1)
    def _():
        # Single sublane reduce at the very end; lane axis stays 128-wide and
        # is collapsed (together with the per-core partials) in the wrapper.
        o_ref[...] = jnp.sum(acc_ref[...], axis=0, keepdims=True)[None]


def _pallas_sum_sq_diff(preds: jax.Array, targets: jax.Array) -> jax.Array:
    """Sum of squared differences, computed in a Pallas TPU kernel."""
    assert preds.shape == targets.shape
    n = preds.size

    rem = n % _LANES
    if rem != 0:
        # TODO(synk): rare fallback for element counts not divisible by 128
        # lanes; this pads (copies) the flat inputs.  Zero padding contributes
        # 0 to the sum so it stays numerically exact.
        pad = _LANES - rem
        p_flat = jnp.pad(preds.reshape(-1), (0, pad))
        t_flat = jnp.pad(targets.reshape(-1), (0, pad))
    else:
        # Reshape of a contiguous array is free: no pad, no cast, no HBM copy.
        p_flat = preds.reshape(-1)
        t_flat = targets.reshape(-1)

    rows = p_flat.size // _LANES
    p2d = p_flat.reshape(rows, _LANES)
    t2d = t_flat.reshape(rows, _LANES)

    # Block second-to-last dim must be a multiple of 8 or equal the full dim.
    block_rows = _DEFAULT_BLOCK_ROWS if rows >= _DEFAULT_BLOCK_ROWS else rows
    total_blocks = pl.cdiv(rows, block_rows)

    # Leading "parallel" axis: on v7x each TensorCore streams half the blocks
    # into its own partial-output row; on v5e/v6e (1 TC) it is a serial outer
    # loop of size <= 2, i.e. effectively a no-op.
    num_parts = 2 if total_blocks >= 2 else 1
    blocks_per_part = pl.cdiv(total_blocks, num_parts)
    needs_mask = (num_parts * blocks_per_part * block_rows) > rows

    kernel = functools.partial(
        _sq_diff_sum_kernel,
        blocks_per_part=blocks_per_part,
        block_rows=block_rows,
        rows=rows,
        needs_mask=needs_mask,
    )

    def in_map(c, b):
        # Clamp so phantom blocks (odd total_blocks split over 2 parts) stay
        # in bounds; the in-kernel mask zeroes their contribution.
        blk = jnp.minimum(c * blocks_per_part + b, total_blocks - 1)
        return (blk, 0)

    partials = pl.pallas_call(
        kernel,
        out_shape=jax.ShapeDtypeStruct((num_parts, 1, _LANES), jnp.float32),
        grid_spec=pltpu.PrefetchScalarGridSpec(
            num_scalar_prefetch=0,
            grid=(num_parts, blocks_per_part),
            in_specs=[
                pl.BlockSpec((block_rows, _LANES), in_map),
                pl.BlockSpec((block_rows, _LANES), in_map),
            ],
            out_specs=pl.BlockSpec((1, 1, _LANES), lambda c, b: (c, 0, 0)),
            scratch_shapes=[pltpu.VMEM((block_rows, _LANES), jnp.float32)],
        ),
        compiler_params=pltpu.CompilerParams(
            dimension_semantics=("parallel", "arbitrary"),
        ),
    )(p2d, t2d)

    # Tiny (num_parts, 1, 128) -> scalar reduce; negligible.
    return jnp.sum(partials)


# ----------------------------------------------------------------------------
# BaseLoss: faithful translation of the PyTorch abstract base class.
# ----------------------------------------------------------------------------
class BaseLoss:
    def __init__(self):
        # No parameters in the PyTorch module.
        pass

    def forward(self, preds, targets):
        # Abstract method in the reference module; subclasses must override.
        # The Pallas hot-path scaffold (_pallas_sum_sq_diff) above is what a
        # concrete subclass would call.
        raise NotImplementedError(
            "The forward method should be overridden by subclasses"
        )

    def __call__(self, preds, targets):
        return self.forward(preds, targets)


if __name__ == "__main__":
    key = jax.random.PRNGKey(0)
    k1, k2 = jax.random.split(key)
    # Small shapes consistent with a loss over NCHW predictions.
    preds = jax.random.normal(k1, (2, 4, 16, 16), dtype=jnp.float32)
    targets = jax.random.normal(k2, (2, 4, 16, 16), dtype=jnp.float32)

    # 1) Faithful base-class semantics: forward must raise NotImplementedError.
    loss_mod = BaseLoss()
    raised = False
    try:
        loss_mod(preds, targets)
    except NotImplementedError:
        raised = True
    assert raised, "BaseLoss.forward must raise NotImplementedError"

    # 2) Exercise the Pallas reduction scaffold once on TPU and verify it.
    out = _pallas_sum_sq_diff(preds, targets)
    out = jax.block_until_ready(out)
    ref = jnp.sum((preds - targets) ** 2)
    assert jnp.allclose(out, ref, rtol=1e-5, atol=1e-4), (out, ref)

    print("KERNEL_OK")
</pallas_src>

<mosaic_0001>
module attributes {stable_mosaic.version = 11 : i64} {
  func.func @_sq_diff_sum_kernel(%arg0: i32, %arg1: i32, %arg2: memref<16x128xf32, #tpu.memory_space<vmem>>, %arg3: memref<16x128xf32, #tpu.memory_space<vmem>>, %arg4: memref<1x1x128xf32, #tpu.memory_space<vmem>>, %arg5: memref<16x128xf32, #tpu.memory_space<vmem>>) attributes {dimension_semantics = [#tpu.dimension_semantics<parallel>, #tpu.dimension_semantics<arbitrary>], iteration_bounds = array<i64: 1, 1>, scalar_prefetch = 0 : i64, scratch_operands = 1 : i64, tpu.core_type = #tpu.core_type<tc>, window_params = [{transform_indices = @transform_0, window_bounds = array<i64: 16, 128>}, {transform_indices = @transform_1, window_bounds = array<i64: 16, 128>}, {transform_indices = @transform_2, window_bounds = array<i64: 1, 1, 128>}]} {
    %c0_i32 = arith.constant 0 : i32
    %0 = arith.cmpi eq, %arg1, %c0_i32 : i32
    %1 = arith.extui %0 : i1 to i32
    %c0_i32_0 = arith.constant 0 : i32
    %2 = arith.cmpi ne, %1, %c0_i32_0 : i32
    scf.if %2 {
      %cst = arith.constant 0.000000e+00 : f32
      %13 = vector.broadcast %cst : f32 to vector<16x128xf32>
      %c0_10 = arith.constant 0 : index
      %c0_11 = arith.constant 0 : index
      %14 = vector.load %arg5[%c0_10, %c0_11] : memref<16x128xf32, #tpu.memory_space<vmem>>, vector<16x128xf32>
      tpu.vector_store %arg5[%c0_10, %c0_11], %13 {strides = array<i32>} : memref<16x128xf32, #tpu.memory_space<vmem>>, vector<16x128xf32>,
    } else {
    }
    %c0 = arith.constant 0 : index
    %c0_1 = arith.constant 0 : index
    %3 = vector.load %arg2[%c0, %c0_1] : memref<16x128xf32, #tpu.memory_space<vmem>>, vector<16x128xf32>
    %c0_2 = arith.constant 0 : index
    %c0_3 = arith.constant 0 : index
    %4 = vector.load %arg3[%c0_2, %c0_3] : memref<16x128xf32, #tpu.memory_space<vmem>>, vector<16x128xf32>
    %5 = arith.subf %3, %4 : vector<16x128xf32>
    %6 = arith.mulf %5, %5 : vector<16x128xf32>
    %c0_4 = arith.constant 0 : index
    %c0_5 = arith.constant 0 : index
    %7 = vector.load %arg5[%c0_4, %c0_5] : memref<16x128xf32, #tpu.memory_space<vmem>>, vector<16x128xf32>
    %8 = arith.addf %7, %6 : vector<16x128xf32>
    %c0_6 = arith.constant 0 : index
    %c0_7 = arith.constant 0 : index
    %9 = vector.load %arg5[%c0_6, %c0_7] : memref<16x128xf32, #tpu.memory_space<vmem>>, vector<16x128xf32>
    tpu.vector_store %arg5[%c0_6, %c0_7], %8 {strides = array<i32>} : memref<16x128xf32, #tpu.memory_space<vmem>>, vector<16x128xf32>,
    %c0_i32_8 = arith.constant 0 : i32
    %10 = arith.cmpi eq, %arg1, %c0_i32_8 : i32
    %11 = arith.extui %10 : i1 to i32
    %c0_i32_9 = arith.constant 0 : i32
    %12 = arith.cmpi ne, %11, %c0_i32_9 : i32
    scf.if %12 {
      %c0_10 = arith.constant 0 : index
      %c0_11 = arith.constant 0 : index
      %13 = vector.load %arg5[%c0_10, %c0_11] : memref<16x128xf32, #tpu.memory_space<vmem>>, vector<16x128xf32>
      %cst = arith.constant dense<0.000000e+00> : vector<128xf32>
      %14 = vector.multi_reduction <add>, %13, %cst [0] : vector<16x128xf32> to vector<128xf32>
      %15 = vector.shape_cast %14 : vector<128xf32> to vector<1x128xf32>
      %16 = vector.shape_cast %15 : vector<1x128xf32> to vector<1x1x128xf32>
      %c0_12 = arith.constant 0 : index
      %c0_13 = arith.constant 0 : index
      %c0_14 = arith.constant 0 : index
      %17 = vector.load %arg4[%c0_12, %c0_13, %c0_14] : memref<1x1x128xf32, #tpu.memory_space<vmem>>, vector<1x1x128xf32>
      tpu.vector_store %arg4[%c0_12, %c0_13, %c0_14], %16 {strides = array<i32>} : memref<1x1x128xf32, #tpu.memory_space<vmem>>, vector<1x1x128xf32>,
    } else {
    }
    return
  }
  func.func @transform_0(%arg0: i32, %arg1: i32) -> (i32, i32) {
    %c1_i32 = arith.constant 1 : i32
    %0 = arith.muli %arg0, %c1_i32 : i32
    %1 = arith.addi %0, %arg1 : i32
    %c0_i32 = arith.constant 0 : i32
    %2 = arith.minsi %1, %c0_i32 : i32
    %c0_i32_0 = arith.constant 0 : i32
    %c0_i32_1 = arith.constant 0 : i32
    return %2, %c0_i32_0 : i32, i32
  }
  func.func @transform_1(%arg0: i32, %arg1: i32) -> (i32, i32) {
    %c1_i32 = arith.constant 1 : i32
    %0 = arith.muli %arg0, %c1_i32 : i32
    %1 = arith.addi %0, %arg1 : i32
    %c0_i32 = arith.constant 0 : i32
    %2 = arith.minsi %1, %c0_i32 : i32
    %c0_i32_0 = arith.constant 0 : i32
    %c0_i32_1 = arith.constant 0 : i32
    return %2, %c0_i32_0 : i32, i32
  }
  func.func @transform_2(%arg0: i32, %arg1: i32) -> (i32, i32, i32) {
    %c0_i32 = arith.constant 0 : i32
    %c0_i32_0 = arith.constant 0 : i32
    %c0_i32_1 = arith.constant 0 : i32
    return %arg0, %c0_i32, %c0_i32_0 : i32, i32, i32
  }
}

</mosaic_0001>

<llo_original>
// kernel: tpu_custom_call.1
$region0: #{tpu_custom_call.1}
  #allocation0 [shape = 'u32[]', space=smem, size = 0x4, offset = 0x4, fixed_abs, tag = 'smem constant byte address 0x4 - core index']
  #allocation1 [shape = 'u32[144,128]{1,0:T(1,128)}', space=vmem, size = 0x12000, scoped, tag = 'internal scratch']
  #allocation2 [shape = 'f32[16,128]{1,0:T(8,128)}', space=vmem, size = 0x2000, scoped, tag = 'scratch operand']
  %s0 = inlined_call_operand.hbm [shape: f32[16,128], index: 0, kind: input, shape index: {}]
  %s1 = inlined_call_operand.hbm [shape: f32[16,128], index: 1, kind: input, shape index: {}]
  %s2 = inlined_call_operand.hbm [shape: f32[1,1,128], index: 2, kind: output, shape index: {}]
  %s3 = sld [smem:[#allocation0]]
  $region34: #{tpu_custom_call.1} parent=0
    _
  %s5 = ssub.s32 1, %s3
  %s6 = scalar_select 0, %s5, %s3
  $region1: #{tpu_custom_call.1} parent=0
    #allocation3 [shape = 'u8[8192]{0}', space=vmem, size = 0x2000, scoped, tag = 'input window, operand 0, single buffered']
    #allocation4 [shape = 's32[1]{0}', space=sflag, size = 0x4, scoped, tag = 'scoped memory for tpu_custom_call.1']
    #allocation5 [shape = 's32[1]{0}', space=sflag, size = 0x4, scoped, tag = 'scoped memory for tpu_custom_call.1']
    #allocation6 [shape = 'u8[8192]{0}', space=vmem, size = 0x2000, scoped, tag = 'input window, operand 1, single buffered']
    #allocation7 [shape = 's32[1]{0}', space=sflag, size = 0x4, scoped, tag = 'scoped memory for tpu_custom_call.1']
    #allocation8 [shape = 'u8[512]{0}', space=vmem, size = 0x400, scoped, tag = 'output window, operand 0, single buffered']
    %7 = vsyncpa [#allocation4], 0
    %8 = vsyncpa [#allocation7], 0
    %9 = vsyncpa [#allocation5], 0
    // Predicated region
    $region2: #{tpu_custom_call.1} parent=1 // pred_check
      _
    $region3: #{tpu_custom_call.1} parent=1 // pred_check_branch
      %11 = sbr.rel (0) target = $region5
    $region4: #{tpu_custom_call.1} parent=1 // pred_region
      %s12 = sadd.s32 0, 0
      %p13 = scmp.lt.s32.totalorder %s12, 0
      %s14 = scalar_select %p13, %s12, 0
      %s15 = smul.u32 2, %s14
      %s17 = ssub.s32 256, 256
      %18 = vsyncadd [#allocation4], %s17
      %s19 = smul.addr %s15, 128
      %s20 = scalar_lea.hbm %s0, %s19
      %s21 = sshll.u32 [#allocation3], 4
      %s22 = int_to_ptr.vmem [resolvable:$true] %s21
      %27 = dma.hbm_to_vmem [thread:$0]  %s20, 256, %s22, [#allocation4], 128, 128, 8
    $region5: #{tpu_custom_call.1} parent=1 // pred_fallthru
      _
    // Predicated region
    $region6: #{tpu_custom_call.1} parent=1 // pred_check
      _
    $region7: #{tpu_custom_call.1} parent=1 // pred_check_branch
      %29 = sbr.rel (0) target = $region9
    $region8: #{tpu_custom_call.1} parent=1 // pred_region
      %s30 = sadd.s32 0, 0
      %p31 = scmp.lt.s32.totalorder %s30, 0
      %s32 = scalar_select %p31, %s30, 0
      %s33 = smul.u32 2, %s32
      %s35 = ssub.s32 256, 256
      %36 = vsyncadd [#allocation7], %s35
      %s37 = smul.addr %s33, 128
      %s38 = scalar_lea.hbm %s1, %s37
      %s39 = sshll.u32 [#allocation6], 4
      %s40 = int_to_ptr.vmem [resolvable:$true] %s39
      %45 = dma.hbm_to_vmem [thread:$0]  %s38, 256, %s40, [#allocation7], 128, 128, 8
    $region9: #{tpu_custom_call.1} parent=1 // pred_fallthru
      _
    // Predicated region
    $region10: #{tpu_custom_call.1} parent=1 // pred_check
      _
    $region11: #{tpu_custom_call.1} parent=1 // pred_check_branch
      %47 = sbr.rel (0) target = $region13
    $region12: #{tpu_custom_call.1} parent=1 // pred_region
      %48 = dma.done [#allocation4], 256
    $region13: #{tpu_custom_call.1} parent=1 // pred_fallthru
      _
    // Predicated region
    $region14: #{tpu_custom_call.1} parent=1 // pred_check
      _
    $region15: #{tpu_custom_call.1} parent=1 // pred_check_branch
      %50 = sbr.rel (0) target = $region17
    $region16: #{tpu_custom_call.1} parent=1 // pred_region
      %51 = dma.done [#allocation7], 256
    $region17: #{tpu_custom_call.1} parent=1 // pred_fallthru
      _
    %s52 = sadd.s32 0, 0
    %p53 = scmp.lt.s32.totalorder %s52, 0
    %s54 = scalar_select %p53, %s52, 0
    %s55 = smul.u32 2, %s54
    %s56 = sadd.s32 0, 0
    %p57 = scmp.lt.s32.totalorder %s56, 0
    %s58 = scalar_select %p57, %s56, 0
    %s59 = smul.u32 2, %s58
    %p60 = scmp.eq.s32.totalorder 0, 0
    // Predicated region
    $region18: #{tpu_custom_call.1} parent=1 // pred_check
      %p61 = pneg %p60
    $region19: #{tpu_custom_call.1} parent=1 // pred_check_branch
      %63 = sbr.rel (%p61) target = $region21
    $region20: #{tpu_custom_call.1} parent=1 // pred_region
      %64 = vst [vmem:[#allocation2] sm:$0xff] 0.0
      %65 = vst [vmem:[#allocation2 + $0x8] sm:$0xff] 0.0
    $region21: #{tpu_custom_call.1} parent=1 // pred_fallthru
      _
    %v66 = vld [vmem:[#allocation3] sm:$0xff]
    %v67 = vld [vmem:[#allocation3 + $0x8] sm:$0xff]
    %v68 = vld [vmem:[#allocation6] sm:$0xff]
    %v69 = vld [vmem:[#allocation6 + $0x8] sm:$0xff]
    %v70 = vsub.f32 %v66, %v68
    %v71 = vsub.f32 %v67, %v69
    %v72 = vmul.f32 %v70, %v70
    %v73 = vmul.f32 %v71, %v71
    %v74 = vld [vmem:[#allocation2] sm:$0xff]
    %v75 = vld [vmem:[#allocation2 + $0x8] sm:$0xff]
    %v76 = vadd.f32 %v74, %v72
    %v77 = vadd.f32 %v75, %v73
    %78 = vst [vmem:[#allocation2] sm:$0xff] %v76
    %79 = vst [vmem:[#allocation2 + $0x8] sm:$0xff] %v77
    // Predicated region
    $region22: #{tpu_custom_call.1} parent=1 // pred_check
      %p80 = pneg %p60
    $region23: #{tpu_custom_call.1} parent=1 // pred_check_branch
      %82 = sbr.rel (%p80) target = $region25
    $region24: #{tpu_custom_call.1} parent=1 // pred_region
      %v83 = vld [vmem:[#allocation2] sm:$0xff]
      %v84 = vld [vmem:[#allocation2 + $0x8] sm:$0xff]
      %v85 = vadd.f32 %v83, %v84
      %v86 = vrot.slane %v85, 4
      %v87 = vadd.f32 %v85, %v86
      %v88 = vrot.slane %v87, 2
      %v89 = vadd.f32 %v87, %v88
      %v90 = vrot.slane %v89, 1
      %v91 = vadd.f32 %v89, %v90
      %92 = vst [vmem:[#allocation8] sm:$0x1] %v91
    $region25: #{tpu_custom_call.1} parent=1 // pred_fallthru
      _
    // Predicated region
    $region26: #{tpu_custom_call.1} parent=1 // pred_check
      _
    $region27: #{tpu_custom_call.1} parent=1 // pred_check_branch
      %94 = sbr.rel (0) target = $region29
    $region28: #{tpu_custom_call.1} parent=1 // pred_region
      %s96 = ssub.s32 16, 16
      %97 = vsyncadd [#allocation5], %s96
      %s99 = sshll.u32 [#allocation8], 4
      %s100 = int_to_ptr.vmem [resolvable:$true] %s99
      %102 = dma.vmem_to_hbm [thread:$0]  %s100, 16, %s2, [#allocation5]
    $region29: #{tpu_custom_call.1} parent=1 // pred_fallthru
      _
    // Predicated region
    $region30: #{tpu_custom_call.1} parent=1 // pred_check
      _
    $region31: #{tpu_custom_call.1} parent=1 // pred_check_branch
      %104 = sbr.rel (0) target = $region33
    $region32: #{tpu_custom_call.1} parent=1 // pred_region
      %105 = dma.done [#allocation5], 16
    $region33: #{tpu_custom_call.1} parent=1 // pred_fallthru
      _
    %106 = vsyncpa [#allocation4], 1
    %107 = vsyncpa [#allocation7], 1
    %108 = vsyncpa [#allocation5], 1

</llo_original>
